<compile_context>
chip_gen: v7x
topology: tpu7x:2x2x1
jax: 0.10.0
libtpu: 0.0.40
codegen_flags: <defaults>
</compile_context>

<pallas_src>
from functools import partial

import numpy as np
import jax
import jax.numpy as jnp
from jax.experimental import pallas as pl
from jax.experimental.pallas import tpu as pltpu


# ----------------------------------------------------------------------------
# Random-rectangle helpers (host-side, numpy) — faithful to the reference,
# including the original's use of width_ratio_range[0] for both min and max.
# ----------------------------------------------------------------------------
def random_float(mn, mx):
    return np.random.rand() * (mx - mn) + mn


def get_random_rectangle_inside(image_shape, height_ratio_range, width_ratio_range):
    image_height = image_shape[2]
    image_width = image_shape[3]
    remaining_height = int(
        np.rint(random_float(height_ratio_range[0], height_ratio_range[1]) * image_height)
    )
    remaining_width = int(
        np.rint(random_float(width_ratio_range[0], width_ratio_range[0]) * image_width)
    )
    if remaining_height == image_height:
        height_start = 0
    else:
        height_start = np.random.randint(0, image_height - remaining_height)
    if remaining_width == image_width:
        width_start = 0
    else:
        width_start = np.random.randint(0, image_width - remaining_width)
    return (height_start, height_start + remaining_height,
            width_start, width_start + remaining_width)


# ----------------------------------------------------------------------------
# Tiling helpers
# ----------------------------------------------------------------------------
_TARGET_BLOCK_BYTES = 2 * 1024 * 1024   # per-array per-block roofline sweet spot
_MIN_BLOCK_BYTES = 256 * 1024
_MIN_GRID_STEPS = 8                     # ~ 2 TensorCores x pipeline depth x 2


def _sublane_multiple(dtype):
    return {4: 8, 2: 16, 1: 32}.get(jnp.dtype(dtype).itemsize, 8)


def _largest_aligned_divisor(n, align, upper):
    """Largest multiple of `align` that divides n and is <= upper (0 if none)."""
    best = 0
    upper = min(int(upper), n)
    m = align
    while m <= upper:
        if n % m == 0:
            best = m
        m += align
    return best


def _choose_tiles(rows, cols, dtype):
    """Pick (row_tile, col_tile) for the flattened (rows, cols) layout."""
    itemsize = jnp.dtype(dtype).itemsize
    sub = _sublane_multiple(dtype)
    total = rows * cols * itemsize

    # Per-array per-block byte budget: stay in the 0.25-2 MiB sweet spot and
    # keep >= _MIN_GRID_STEPS grid steps once there is enough data.
    cap = _TARGET_BLOCK_BYTES
    if total > _MIN_GRID_STEPS * _MIN_BLOCK_BYTES:
        cap = max(_MIN_BLOCK_BYTES, min(cap, total // _MIN_GRID_STEPS))

    # ---- column (lane) tile: assume the minimal sublane-aligned row tile ----
    min_tb = min(rows, sub)
    bc = cols
    if cols % 128 == 0 and min_tb * cols * itemsize > cap:
        budget_cols = max(128, cap // (min_tb * itemsize))
        bc = _largest_aligned_divisor(cols, 128, budget_cols) or 128

    # ---- row (sublane) tile ----
    if rows <= sub:
        tb = rows                                  # full extent (always legal)
    else:
        budget_rows = max(sub, cap // max(1, bc * itemsize))
        tb = _largest_aligned_divisor(rows, sub, budget_rows)
        if tb == 0:
            # No sublane-aligned divisor of rows: fall back to the full row
            # extent (legal block) and re-shrink the column tile if needed.
            tb = rows
            if cols % 128 == 0 and tb * bc * itemsize > cap:
                budget_cols = max(128, cap // (tb * itemsize))
                bc = _largest_aligned_divisor(cols, 128, budget_cols) or 128
    return tb, bc


def _vmem_limit_bytes(block_bytes):
    """Scoped-VMEM request derived from the actual tiling need."""
    need = 3 * 2 * block_bytes            # 3 arrays x double-buffered pipeline
    req = max(int(need * 1.5) + (4 << 20), 32 << 20)
    try:
        phys = int(pltpu.get_tpu_info().vmem_capacity_bytes)
    except Exception:
        phys = 64 << 20                   # v7x per-TensorCore VMEM (smallest)
    return min(req, int(phys * 0.9))


# ----------------------------------------------------------------------------
# Pallas kernel (flattened 2-D layout: (N*C, H*W), 2-D grid)
# ----------------------------------------------------------------------------
def _cropout_kernel(rect_ref, noised_ref, cover_ref, out_ref, *, width, block_cols):
    # rect_ref: SMEM int32[4] = (h_start, h_end, w_start, w_end)
    h0 = rect_ref[0]
    h1 = rect_ref[1]
    w0 = rect_ref[2]
    w1 = rect_ref[3]

    # Mask depends only on the flattened column index: build it on a thin
    # (1, block_cols) strip and let jnp.where broadcast it across the rows.
    j = pl.program_id(1)
    col = jax.lax.broadcasted_iota(jnp.int32, (1, block_cols), 1) + j * block_cols
    if width & (width - 1) == 0:            # power of two: shift/and (static)
        shift = int(width).bit_length() - 1
        hh = col >> shift
        ww = col & (width - 1)
    else:
        hh = col // width
        ww = col - hh * width

    inside = (hh >= h0) & (hh < h1) & (ww >= w0) & (ww < w1)

    # Blend in the native dtype: noised inside the rectangle, cover outside.
    out_ref[...] = jnp.where(inside, noised_ref[...], cover_ref[...])


def cropout(noised, cover, rect, *, donate_noised=False):
    """noised, cover: (N, C, H, W); rect: int32[4] (h0, h1, w0, w1).

    donate_noised=True aliases the output onto `noised` (use when the caller
    donates it, e.g. under jit with donate_argnums); otherwise XLA may insert
    a defensive copy, so it defaults to False.
    """
    assert noised.shape == cover.shape
    assert noised.dtype == cover.dtype
    N, C, H, W = noised.shape
    rows = N * C
    cols = H * W

    # Lane-dense layout: last dim becomes H*W so vregs/stores are full-width.
    noised2 = noised.reshape(rows, cols)
    cover2 = cover.reshape(rows, cols)

    itemsize = jnp.dtype(noised.dtype).itemsize
    tb, bc = _choose_tiles(rows, cols, noised.dtype)
    grid = (pl.cdiv(rows, tb), pl.cdiv(cols, bc))

    grid_spec = pltpu.PrefetchScalarGridSpec(
        num_scalar_prefetch=1,
        grid=grid,
        in_specs=[
            pl.BlockSpec((tb, bc), lambda i, j, rect: (i, j)),
            pl.BlockSpec((tb, bc), lambda i, j, rect: (i, j)),
        ],
        out_specs=pl.BlockSpec((tb, bc), lambda i, j, rect: (i, j)),
    )

    out2 = pl.pallas_call(
        partial(_cropout_kernel, width=W, block_cols=bc),
        out_shape=jax.ShapeDtypeStruct((rows, cols), noised.dtype),
        grid_spec=grid_spec,
        compiler_params=pltpu.CompilerParams(
            dimension_semantics=("parallel", "parallel"),
            vmem_limit_bytes=_vmem_limit_bytes(tb * bc * itemsize),
        ),
        input_output_aliases={1: 0} if donate_noised else {},
    )(rect, noised2, cover2)

    return out2.reshape(N, C, H, W)


class CropoutPallas:
    """JAX/Pallas equivalent of the PyTorch Cropout noise layer."""

    def __init__(self, height_ratio_range, width_ratio_range):
        self.height_ratio_range = height_ratio_range
        self.width_ratio_range = width_ratio_range

    def __call__(self, noised_and_cover):
        noised_image, cover_image = noised_and_cover[0], noised_and_cover[1]
        assert noised_image.shape == cover_image.shape
        h0, h1, w0, w1 = get_random_rectangle_inside(
            noised_image.shape, self.height_ratio_range, self.width_ratio_range
        )
        rect = jnp.asarray([h0, h1, w0, w1], dtype=jnp.int32)
        noised_and_cover[0] = cropout(noised_image, cover_image, rect)
        return noised_and_cover


# ----------------------------------------------------------------------------
# Pure-JAX reference for verification
# ----------------------------------------------------------------------------
def cropout_ref(noised, cover, rect_py):
    h0, h1, w0, w1 = rect_py
    mask = jnp.zeros_like(noised)
    mask = mask.at[:, :, h0:h1, w0:w1].set(1.0)
    return noised * mask + cover * (1.0 - mask)


if __name__ == "__main__":
    np.random.seed(0)
    key = jax.random.PRNGKey(0)
    k1, k2, k3, k4 = jax.random.split(key, 4)

    layer = CropoutPallas(height_ratio_range=(0.25, 0.75),
                          width_ratio_range=(0.25, 0.75))

    # --- main small test shape (NCHW) ------------------------------------
    N, C, H, W = 2, 4, 16, 16
    noised = jax.random.normal(k1, (N, C, H, W), dtype=jnp.float32)
    cover = jax.random.normal(k2, (N, C, H, W), dtype=jnp.float32)

    rect_py = get_random_rectangle_inside(
        noised.shape, layer.height_ratio_range, layer.width_ratio_range
    )
    rect = jnp.asarray(rect_py, dtype=jnp.int32)

    out = jax.block_until_ready(cropout(noised, cover, rect))
    ref = cropout_ref(noised, cover, rect_py)
    np.testing.assert_allclose(np.asarray(out), np.asarray(ref), rtol=0, atol=0)

    # Aliased-output path (output written onto the `noised` buffer).
    out_alias = jax.block_until_ready(cropout(noised, cover, rect, donate_noised=True))
    np.testing.assert_allclose(np.asarray(out_alias), np.asarray(ref), rtol=0, atol=0)

    # --- secondary shape: non-power-of-two W, H*W not a multiple of 128 ---
    N2, C2, H2, W2 = 2, 3, 12, 20
    noised_b = jax.random.normal(k3, (N2, C2, H2, W2), dtype=jnp.float32)
    cover_b = jax.random.normal(k4, (N2, C2, H2, W2), dtype=jnp.float32)
    rect_py_b = get_random_rectangle_inside(
        noised_b.shape, layer.height_ratio_range, layer.width_ratio_range
    )
    rect_b = jnp.asarray(rect_py_b, dtype=jnp.int32)
    out_b = jax.block_until_ready(cropout(noised_b, cover_b, rect_b))
    ref_b = cropout_ref(noised_b, cover_b, rect_py_b)
    np.testing.assert_allclose(np.asarray(out_b), np.asarray(ref_b), rtol=0, atol=0)

    # Module-style wrapper once (draws its own rectangle).
    _ = jax.block_until_ready(layer([noised, cover])[0])

    print("KERNEL_OK")
</pallas_src>

<mosaic_0001>
module attributes {stable_mosaic.version = 11 : i64} {
  func.func @_cropout_kernel(%arg0: i32, %arg1: i32, %arg2: memref<4xi32, #tpu.memory_space<smem>>, %arg3: memref<8x256xf32, #tpu.memory_space<vmem>>, %arg4: memref<8x256xf32, #tpu.memory_space<vmem>>, %arg5: memref<8x256xf32, #tpu.memory_space<vmem>>) attributes {dimension_semantics = [#tpu.dimension_semantics<parallel>, #tpu.dimension_semantics<parallel>], iteration_bounds = array<i64: 1, 1>, scalar_prefetch = 1 : i64, scratch_operands = 0 : i64, tpu.core_type = #tpu.core_type<tc>, window_params = [{transform_indices = @transform_0, window_bounds = array<i64: 8, 256>}, {transform_indices = @transform_1, window_bounds = array<i64: 8, 256>}, {transform_indices = @transform_2, window_bounds = array<i64: 8, 256>}]} {
    %c0 = arith.constant 0 : index
    %0 = memref.load %arg2[%c0] : memref<4xi32, #tpu.memory_space<smem>>
    %c1 = arith.constant 1 : index
    %1 = memref.load %arg2[%c1] : memref<4xi32, #tpu.memory_space<smem>>
    %c2 = arith.constant 2 : index
    %2 = memref.load %arg2[%c2] : memref<4xi32, #tpu.memory_space<smem>>
    %c3 = arith.constant 3 : index
    %3 = memref.load %arg2[%c3] : memref<4xi32, #tpu.memory_space<smem>>
    %4 = tpu.iota {dimensions = array<i32: 1>} : vector<1x256xi32>
    %c256_i32 = arith.constant 256 : i32
    %5 = arith.muli %arg1, %c256_i32 : i32
    %6 = vector.broadcast %5 : i32 to vector<1x256xi32>
    %7 = arith.addi %4, %6 : vector<1x256xi32>
    %c4_i32 = arith.constant 4 : i32
    %8 = vector.broadcast %c4_i32 : i32 to vector<1x256xi32>
    %9 = arith.shrsi %7, %8 : vector<1x256xi32>
    %c15_i32 = arith.constant 15 : i32
    %10 = vector.broadcast %c15_i32 : i32 to vector<1x256xi32>
    %11 = arith.andi %7, %10 : vector<1x256xi32>
    %12 = vector.broadcast %0 : i32 to vector<1x256xi32>
    %13 = arith.cmpi sge, %9, %12 : vector<1x256xi32>
    %14 = vector.broadcast %1 : i32 to vector<1x256xi32>
    %15 = arith.cmpi slt, %9, %14 : vector<1x256xi32>
    %16 = arith.andi %13, %15 : vector<1x256xi1>
    %17 = vector.broadcast %2 : i32 to vector<1x256xi32>
    %18 = arith.cmpi sge, %11, %17 : vector<1x256xi32>
    %19 = arith.andi %16, %18 : vector<1x256xi1>
    %20 = vector.broadcast %3 : i32 to vector<1x256xi32>
    %21 = arith.cmpi slt, %11, %20 : vector<1x256xi32>
    %22 = arith.andi %19, %21 : vector<1x256xi1>
    %c0_0 = arith.constant 0 : index
    %c0_1 = arith.constant 0 : index
    %23 = vector.load %arg3[%c0_0, %c0_1] : memref<8x256xf32, #tpu.memory_space<vmem>>, vector<8x256xf32>
    %c0_2 = arith.constant 0 : index
    %c0_3 = arith.constant 0 : index
    %24 = vector.load %arg4[%c0_2, %c0_3] : memref<8x256xf32, #tpu.memory_space<vmem>>, vector<8x256xf32>
    %25 = vector.shape_cast %22 : vector<1x256xi1> to vector<1x256xi1>
    %26 = vector.broadcast %25 : vector<1x256xi1> to vector<8x256xi1>
    %27 = arith.select %26, %23, %24 : vector<8x256xi1>, vector<8x256xf32>
    %c0_4 = arith.constant 0 : index
    %c0_5 = arith.constant 0 : index
    %28 = vector.load %arg5[%c0_4, %c0_5] : memref<8x256xf32, #tpu.memory_space<vmem>>, vector<8x256xf32>
    tpu.vector_store %arg5[%c0_4, %c0_5], %27 {strides = array<i32>} : memref<8x256xf32, #tpu.memory_space<vmem>>, vector<8x256xf32>,
    return
  }
  func.func @transform_0(%arg0: i32, %arg1: i32, %arg2: memref<4xi32, #tpu.memory_space<smem>>) -> (i32, i32) {
    %c0_i32 = arith.constant 0 : i32
    return %arg0, %arg1 : i32, i32
  }
  func.func @transform_1(%arg0: i32, %arg1: i32, %arg2: memref<4xi32, #tpu.memory_space<smem>>) -> (i32, i32) {
    %c0_i32 = arith.constant 0 : i32
    return %arg0, %arg1 : i32, i32
  }
  func.func @transform_2(%arg0: i32, %arg1: i32, %arg2: memref<4xi32, #tpu.memory_space<smem>>) -> (i32, i32) {
    %c0_i32 = arith.constant 0 : i32
    return %arg0, %arg1 : i32, i32
  }
}

</mosaic_0001>

<llo_original>
// kernel: tpu_custom_call.1
$region0: #{tpu_custom_call.1}
  #allocation0 [shape = 'u32[]', space=smem, size = 0x4, offset = 0x4, fixed_abs, tag = 'smem constant byte address 0x4 - core index']
  #allocation1 [shape = 'u32[144,128]{1,0:T(1,128)}', space=vmem, size = 0x12000, scoped, tag = 'internal scratch']
  #allocation2 [shape = 's32[1]{0}', space=sflag, size = 0x4, scoped, tag = 'scoped memory for tpu_custom_call.1']
  #allocation3 [shape = 'u8[512]{0}', space=smem, size = 0x200, scoped, tag = 'prefetched SMEM operand 0']
  %s0 = inlined_call_operand.hbm [shape: s32[4], index: 0, kind: input, shape index: {}]
  %s1 = inlined_call_operand.hbm [shape: f32[8,256], index: 1, kind: input, shape index: {}]
  %s2 = inlined_call_operand.hbm [shape: f32[8,256], index: 2, kind: input, shape index: {}]
  %s3 = inlined_call_operand.hbm [shape: f32[8,256], index: 3, kind: output, shape index: {}]
  %s4 = sld [smem:[#allocation0]]
  $region26: #{tpu_custom_call.1} parent=0
    _
  %s6 = ssub.s32 1, %s4
  %s7 = scalar_select 0, %s6, %s4
  %9 = dma.hbm_to_smem %s0, 16, [#allocation3], [#allocation2]
  %10 = dma.done [#allocation2], 16
  %11 = sfence
  $region1: #{tpu_custom_call.1} parent=0
    #allocation4 [shape = 'u8[8192]{0}', space=vmem, size = 0x2000, scoped, tag = 'input window, operand 1, single buffered']
    #allocation5 [shape = 's32[1]{0}', space=sflag, size = 0x4, scoped, tag = 'scoped memory for tpu_custom_call.1']
    #allocation6 [shape = 's32[1]{0}', space=sflag, size = 0x4, scoped, tag = 'scoped memory for tpu_custom_call.1']
    #allocation7 [shape = 'u8[8192]{0}', space=vmem, size = 0x2000, scoped, tag = 'input window, operand 2, single buffered']
    #allocation8 [shape = 's32[1]{0}', space=sflag, size = 0x4, scoped, tag = 'scoped memory for tpu_custom_call.1']
    #allocation9 [shape = 'u8[8192]{0}', space=vmem, size = 0x2000, scoped, tag = 'output window, operand 0, single buffered']
    %12 = vsyncpa [#allocation5], 0
    %13 = vsyncpa [#allocation8], 0
    %14 = vsyncpa [#allocation6], 0
    // Predicated region
    $region2: #{tpu_custom_call.1} parent=1 // pred_check
      _
    $region3: #{tpu_custom_call.1} parent=1 // pred_check_branch
      %16 = sbr.rel (0) target = $region5
    $region4: #{tpu_custom_call.1} parent=1 // pred_region
      %s18 = ssub.s32 256, 256
      %19 = vsyncadd [#allocation5], %s18
      %s21 = sshll.u32 [#allocation4], 4
      %s22 = int_to_ptr.vmem [resolvable:$true] %s21
      %24 = dma.hbm_to_vmem [thread:$0]  %s1, 256, %s22, [#allocation5]
    $region5: #{tpu_custom_call.1} parent=1 // pred_fallthru
      _
    // Predicated region
    $region6: #{tpu_custom_call.1} parent=1 // pred_check
      _
    $region7: #{tpu_custom_call.1} parent=1 // pred_check_branch
      %26 = sbr.rel (0) target = $region9
    $region8: #{tpu_custom_call.1} parent=1 // pred_region
      %s28 = ssub.s32 256, 256
      %29 = vsyncadd [#allocation8], %s28
      %s31 = sshll.u32 [#allocation7], 4
      %s32 = int_to_ptr.vmem [resolvable:$true] %s31
      %34 = dma.hbm_to_vmem [thread:$0]  %s2, 256, %s32, [#allocation8]
    $region9: #{tpu_custom_call.1} parent=1 // pred_fallthru
      _
    // Predicated region
    $region10: #{tpu_custom_call.1} parent=1 // pred_check
      _
    $region11: #{tpu_custom_call.1} parent=1 // pred_check_branch
      %36 = sbr.rel (0) target = $region13
    $region12: #{tpu_custom_call.1} parent=1 // pred_region
      %37 = dma.done [#allocation5], 256
    $region13: #{tpu_custom_call.1} parent=1 // pred_fallthru
      _
    // Predicated region
    $region14: #{tpu_custom_call.1} parent=1 // pred_check
      _
    $region15: #{tpu_custom_call.1} parent=1 // pred_check_branch
      %39 = sbr.rel (0) target = $region17
    $region16: #{tpu_custom_call.1} parent=1 // pred_region
      %40 = dma.done [#allocation8], 256
    $region17: #{tpu_custom_call.1} parent=1 // pred_fallthru
      _
    %s41 = sld [smem:[#allocation3]]
    %s42 = sld [smem:[#allocation3 + $0x1]]
    %s43 = sld [smem:[#allocation3 + $0x2]]
    %s44 = sld [smem:[#allocation3 + $0x3]]
    %v45 = vlaneseq
    %v46 = vand.u32 %v45, 127
    %v47 = vadd.s32 %v46, 128
    %s48 = smul.u32 0, 256
    %v49 = vstv %s48
    %v50 = vadd.s32 %v46, %v49
    %v51 = vadd.s32 %v47, %v49
    %v52 = vshra.s32 %v50, 4
    %v53 = vshra.s32 %v51, 4
    %v54 = vand.u32 %v50, 15
    %v55 = vand.u32 %v51, 15
    %v56 = vstv %s41
    %vm57 = vcmp.ge.s32.totalorder %v52, %v56
    %vm58 = vcmp.ge.s32.totalorder %v53, %v56
    %v59 = vstv %s42
    %vm60 = vcmp.lt.s32.totalorder %v52, %v59
    %vm61 = vcmp.lt.s32.totalorder %v53, %v59
    %vm62 = vmand %vm57, %vm60
    %vm63 = vmand %vm58, %vm61
    %v64 = vstv %s43
    %vm65 = vcmp.ge.s32.totalorder %v54, %v64
    %vm66 = vcmp.ge.s32.totalorder %v55, %v64
    %vm67 = vmand %vm62, %vm65
    %vm68 = vmand %vm63, %vm66
    %v69 = vstv %s44
    %vm70 = vcmp.lt.s32.totalorder %v54, %v69
    %vm71 = vcmp.lt.s32.totalorder %v55, %v69
    %vm72 = vmand %vm67, %vm70
    %vm73 = vmand %vm68, %vm71
    %v74 = vld [vmem:[#allocation4] sm:$0xff]
    %v75 = vld [vmem:[#allocation4 + $0x8] sm:$0xff]
    %v76 = vld [vmem:[#allocation7] sm:$0xff]
    %v77 = vld [vmem:[#allocation7 + $0x8] sm:$0xff]
    %v78 = vsel %vm72, 1, 0
    %v79 = vsel %vm73, 1, 0
    %vm80 = vcmp.eq.s32.totalorder %v78, 1
    %vm81 = vcmp.eq.s32.totalorder %v79, 1
    %v82 = vsel %vm80, %v74, %v76
    %v83 = vsel %vm81, %v75, %v77
    %84 = vst [vmem:[#allocation9] sm:$0xff] %v82
    %85 = vst [vmem:[#allocation9 + $0x8] sm:$0xff] %v83
    // Predicated region
    $region18: #{tpu_custom_call.1} parent=1 // pred_check
      _
    $region19: #{tpu_custom_call.1} parent=1 // pred_check_branch
      %87 = sbr.rel (0) target = $region21
    $region20: #{tpu_custom_call.1} parent=1 // pred_region
      %s89 = ssub.s32 256, 256
      %90 = vsyncadd [#allocation6], %s89
      %s92 = sshll.u32 [#allocation9], 4
      %s93 = int_to_ptr.vmem [resolvable:$true] %s92
      %95 = dma.vmem_to_hbm [thread:$0]  %s93, 256, %s3, [#allocation6]
    $region21: #{tpu_custom_call.1} parent=1 // pred_fallthru
      _
    // Predicated region
    $region22: #{tpu_custom_call.1} parent=1 // pred_check
      _
    $region23: #{tpu_custom_call.1} parent=1 // pred_check_branch
      %97 = sbr.rel (0) target = $region25
    $region24: #{tpu_custom_call.1} parent=1 // pred_region
      %98 = dma.done [#allocation6], 256
    $region25: #{tpu_custom_call.1} parent=1 // pred_fallthru
      _
    %99 = vsyncpa [#allocation5], 1
    %100 = vsyncpa [#allocation8], 1
    %101 = vsyncpa [#allocation6], 1

</llo_original>
